<compile_context>
chip_gen: v5e
topology: v5e:2x2
jax: 0.10.0
libtpu: 0.0.40
codegen_flags: <defaults>
</compile_context>

<pallas_src>
import functools

import jax
import jax.numpy as jnp
from jax import lax
from jax.experimental import pallas as pl
from jax.experimental.pallas import tpu as pltpu


def _round_up(x, m):
    return ((x + m - 1) // m) * m


def _choose_tile(n):
    """Largest lane-dense tile in {512, 256, 128} that divides round_up(n, 128)."""
    n128 = _round_up(n, 128)
    for t in (512, 256, 128):
        if n128 % t == 0:
            return t, _round_up(n, t)
    return 128, n128


def _vmem_limit_bytes():
    """Generation-aware scoped-VMEM limit: ~3/4 of physical, capped at 96 MiB."""
    cap = 128 * 1024 * 1024
    try:
        info = pltpu.get_tpu_info()
        cap = int(getattr(info, "vmem_capacity_bytes", cap))
    except Exception:
        pass
    return int(min(cap * 3 // 4, 96 * 1024 * 1024))


# ---------------------------------------------------------------------------
# Stage 1: 1x1-conv projections (channel matmuls on the MXU), hoisted out of
# the attention loop.  Outputs bf16 so the attention stage streams half the
# bytes and does zero projection work per (qi, ki) step.
# ---------------------------------------------------------------------------
def _proj_kernel(x_ref, wq_ref, bq_ref, wk_ref, wv_ref, bv_ref,
                 q_ref, k_ref, v_ref):
    xb = x_ref[0].astype(jnp.bfloat16)                                  # (C, tn)
    q = jnp.dot(wq_ref[...], xb, preferred_element_type=jnp.float32) + bq_ref[...]
    # bk dropped on purpose: q_i . bk is constant along the softmax (key) axis
    # and cancels exactly in softmax(dim=-1) -> zero numerical effect.
    k = jnp.dot(wk_ref[...], xb, preferred_element_type=jnp.float32)
    v = jnp.dot(wv_ref[...], xb, preferred_element_type=jnp.float32) + bv_ref[...]
    q_ref[0] = q.astype(jnp.bfloat16)
    k_ref[0] = k.astype(jnp.bfloat16)
    v_ref[0] = v.astype(jnp.bfloat16)


# ---------------------------------------------------------------------------
# Stage 2: flash-style spatial self-attention + residual.
# ---------------------------------------------------------------------------
def _pam_attn_kernel(q_ref, k_ref, v_ref, xres_ref, gamma_ref, o_ref,
                     m_sc, l_sc, acc_sc, *, n_valid, need_mask):
    # q_ref   : (1, Cq, tq) bf16, constant over ki (resident per (b, qi))
    # k_ref   : (1, Cq, tk) bf16, streamed over ki
    # v_ref   : (1, C,  tk) bf16, streamed over ki
    # xres_ref: (1, C,  tq) f32 residual, constant over ki
    ki = pl.program_id(2)
    nk = pl.num_programs(2)

    @pl.when(ki == 0)
    def _init():
        m_sc[...] = jnp.full(m_sc.shape, -jnp.inf, dtype=m_sc.dtype)
        l_sc[...] = jnp.zeros(l_sc.shape, dtype=l_sc.dtype)
        acc_sc[...] = jnp.zeros(acc_sc.shape, dtype=acc_sc.dtype)

    q = q_ref[0]
    k = k_ref[0]
    v = v_ref[0]

    # sT[j, i] = <k_j, q_i> == energy[i, j]; contract channel axes of both
    # operands (no explicit transpose).
    sT = lax.dot_general(k, q, dimension_numbers=(((0,), (0,)), ((), ())),
                         preferred_element_type=jnp.float32)            # (tk, tq)

    if need_mask:
        tk = sT.shape[0]
        key_pos = ki * tk + lax.broadcasted_iota(jnp.int32, sT.shape, 0)
        sT = jnp.where(key_pos < n_valid, sT, -jnp.inf)

    # Online softmax over the key axis (axis 0); f32 element-wise math keeps
    # this portable to v5e (no bf16 VPU/EUP).
    m_prev = m_sc[...]                                                  # (1, tq)
    m_new = jnp.maximum(m_prev, jnp.max(sT, axis=0, keepdims=True))
    alpha = jnp.exp(m_prev - m_new)
    p = jnp.exp(sT - m_new)                                             # (tk, tq)
    l_sc[...] = alpha * l_sc[...] + jnp.sum(p, axis=0, keepdims=True)
    # Deferred normalization: accumulate V @ p with unnormalized exponentials.
    acc_sc[...] = alpha * acc_sc[...] + jnp.dot(
        v, p.astype(jnp.bfloat16), preferred_element_type=jnp.float32)  # (C, tq)
    m_sc[...] = m_new

    @pl.when(ki == nk - 1)
    def _finalize():
        inv_l = pl.reciprocal(l_sc[...], approx=True)                   # (1, tq)
        o_ref[0] = xres_ref[0] + gamma_ref[0] * (acc_sc[...] * inv_l)


def pam_forward(x_nchw, wq, bq, wk, bk, wv, bv, gamma):
    """x_nchw: (B, C, H, W) f32.  Weights (out, in) PyTorch-layout, biases (out, 1).
    gamma: (1,) f32.  Returns (B, C, H, W) f32."""
    del bk  # cancels in softmax (see _proj_kernel); kept in signature for parity
    B, C, H, W = x_nchw.shape
    N = H * W
    Cq = wq.shape[0]

    tile, n_pad = _choose_tile(N)
    tq = tk = tile
    n_q = n_pad // tq
    n_k = n_pad // tk
    need_mask = (n_pad != N)

    # Channel-major, spatial-on-lanes layout: a free reshape (no HBM transpose).
    x_bcn = x_nchw.reshape(B, C, N)
    if need_mask:
        x_bcn = jnp.pad(x_bcn, ((0, 0), (0, 0), (0, n_pad - N)))

    # Pre-cast MXU weight operands once; biases stay f32 (added to f32 acc).
    wq_bf = wq.astype(jnp.bfloat16)
    wk_bf = wk.astype(jnp.bfloat16)
    wv_bf = wv.astype(jnp.bfloat16)

    vmem_limit = _vmem_limit_bytes()

    # ---- Stage 1: hoisted Q/K/V projections ------------------------------
    q_all, k_all, v_all = pl.pallas_call(
        _proj_kernel,
        out_shape=(
            jax.ShapeDtypeStruct((B, Cq, n_pad), jnp.bfloat16),
            jax.ShapeDtypeStruct((B, Cq, n_pad), jnp.bfloat16),
            jax.ShapeDtypeStruct((B, C, n_pad), jnp.bfloat16),
        ),
        grid_spec=pltpu.PrefetchScalarGridSpec(
            num_scalar_prefetch=0,
            grid=(B, n_k),
            in_specs=[
                pl.BlockSpec((1, C, tk), lambda b, ni: (b, 0, ni)),   # x
                pl.BlockSpec((Cq, C), lambda b, ni: (0, 0)),          # wq (bf16)
                pl.BlockSpec((Cq, 1), lambda b, ni: (0, 0)),          # bq
                pl.BlockSpec((Cq, C), lambda b, ni: (0, 0)),          # wk (bf16)
                pl.BlockSpec((C, C), lambda b, ni: (0, 0)),           # wv (bf16)
                pl.BlockSpec((C, 1), lambda b, ni: (0, 0)),           # bv
            ],
            out_specs=[
                pl.BlockSpec((1, Cq, tk), lambda b, ni: (b, 0, ni)),  # Q
                pl.BlockSpec((1, Cq, tk), lambda b, ni: (b, 0, ni)),  # K
                pl.BlockSpec((1, C, tk), lambda b, ni: (b, 0, ni)),   # V
            ],
        ),
        compiler_params=pltpu.CompilerParams(
            dimension_semantics=("parallel", "parallel"),
            vmem_limit_bytes=vmem_limit,
        ),
    )(x_bcn, wq_bf, bq, wk_bf, wv_bf, bv)

    # ---- Stage 2: flash attention + residual ------------------------------
    attn_kernel = functools.partial(_pam_attn_kernel, n_valid=N, need_mask=need_mask)
    out_bcn = pl.pallas_call(
        attn_kernel,
        out_shape=jax.ShapeDtypeStruct((B, C, n_pad), jnp.float32),
        grid_spec=pltpu.PrefetchScalarGridSpec(
            num_scalar_prefetch=0,
            grid=(B, n_q, n_k),
            in_specs=[
                pl.BlockSpec((1, Cq, tq), lambda b, qi, ki: (b, 0, qi)),  # Q
                pl.BlockSpec((1, Cq, tk), lambda b, qi, ki: (b, 0, ki)),  # K
                pl.BlockSpec((1, C, tk), lambda b, qi, ki: (b, 0, ki)),   # V
                pl.BlockSpec((1, C, tq), lambda b, qi, ki: (b, 0, qi)),   # residual x
                pl.BlockSpec(memory_space=pltpu.MemorySpace.SMEM),        # gamma
            ],
            out_specs=pl.BlockSpec((1, C, tq), lambda b, qi, ki: (b, 0, qi)),
            scratch_shapes=[
                pltpu.VMEM((1, tq), jnp.float32),   # m: running max
                pltpu.VMEM((1, tq), jnp.float32),   # l: running denominator
                pltpu.VMEM((C, tq), jnp.float32),   # acc: unnormalized output
            ],
        ),
        compiler_params=pltpu.CompilerParams(
            dimension_semantics=("parallel", "parallel", "arbitrary"),
            vmem_limit_bytes=vmem_limit,
        ),
    )(q_all, k_all, v_all, x_bcn, gamma)

    if need_mask:
        out_bcn = out_bcn[:, :, :N]
    return out_bcn.reshape(B, C, H, W)


def pam_reference(x_nchw, wq, bq, wk, bk, wv, bv, gamma):
    """Pure-JAX f32 reference mirroring the PyTorch forward (keeps bk)."""
    B, C, H, W = x_nchw.shape
    N = H * W
    xf = x_nchw.reshape(B, C, N)                              # (B, C, N)
    q = jnp.einsum("oc,bcn->bon", wq, xf) + bq[None]          # (B, Cq, N)
    k = jnp.einsum("oc,bcn->bon", wk, xf) + bk[None]          # (B, Cq, N)
    v = jnp.einsum("oc,bcn->bon", wv, xf) + bv[None]          # (B, C, N)
    energy = jnp.einsum("bci,bcj->bij", q, k)                 # (B, N, N)
    attn = jax.nn.softmax(energy, axis=-1)
    out = jnp.einsum("bij,bcj->bci", attn, v)                 # (B, C, N)
    res = xf + gamma[0] * out
    return res.reshape(B, C, H, W)


if __name__ == "__main__":
    # Small shapes consistent with the module (in_dim >= 8 so C // 8 >= 1).
    # N = 16*18 = 288 -> padded to 384 with 3 key tiles: exercises the flash
    # streaming loop AND the padded-key masking path.
    B, C, H, W = 2, 64, 16, 18
    Cq = C // 8

    key = jax.random.PRNGKey(0)
    kx, kwq, kbq, kwk, kbk, kwv, kbv = jax.random.split(key, 7)

    x = jax.random.normal(kx, (B, C, H, W), dtype=jnp.float32)

    # PyTorch 1x1 conv weights (out, in, 1, 1) squeezed to (out, in); bias (out, 1).
    scale = 0.1
    wq = scale * jax.random.normal(kwq, (Cq, C), dtype=jnp.float32)
    bq = scale * jax.random.normal(kbq, (Cq, 1), dtype=jnp.float32)
    wk = scale * jax.random.normal(kwk, (Cq, C), dtype=jnp.float32)
    bk = scale * jax.random.normal(kbk, (Cq, 1), dtype=jnp.float32)
    wv = scale * jax.random.normal(kwv, (C, C), dtype=jnp.float32)
    bv = scale * jax.random.normal(kbv, (C, 1), dtype=jnp.float32)
    # nn.Parameter(torch.zeros(1)) would make out == x; use nonzero gamma so the
    # attention path is actually exercised and verified.
    gamma = jnp.array([0.5], dtype=jnp.float32)

    out = pam_forward(x, wq, bq, wk, bk, wv, bv, gamma)
    out = jax.block_until_ready(out)

    ref = pam_reference(x, wq, bq, wk, bk, wv, bv, gamma)
    assert out.shape == (B, C, H, W)
    # bf16 MXU operands (f32 accumulation) + approx reciprocal loosen the
    # tolerance slightly vs the pure-f32 reference.
    assert jnp.allclose(out, ref, atol=5e-2, rtol=5e-2), "mismatch vs reference"

    print("KERNEL_OK")
</pallas_src>

<mosaic_0001>
module attributes {stable_mosaic.version = 11 : i64} {
  func.func @_proj_kernel(%arg0: i32, %arg1: i32, %arg2: memref<1x64x128xf32, #tpu.memory_space<vmem>>, %arg3: memref<8x64xbf16, #tpu.memory_space<vmem>>, %arg4: memref<8x1xf32, #tpu.memory_space<vmem>>, %arg5: memref<8x64xbf16, #tpu.memory_space<vmem>>, %arg6: memref<64x64xbf16, #tpu.memory_space<vmem>>, %arg7: memref<64x1xf32, #tpu.memory_space<vmem>>, %arg8: memref<1x8x128xbf16, #tpu.memory_space<vmem>>, %arg9: memref<1x8x128xbf16, #tpu.memory_space<vmem>>, %arg10: memref<1x64x128xbf16, #tpu.memory_space<vmem>>) attributes {dimension_semantics = [#tpu.dimension_semantics<parallel>, #tpu.dimension_semantics<parallel>], iteration_bounds = array<i64: 2, 3>, scalar_prefetch = 0 : i64, scratch_operands = 0 : i64, tpu.core_type = #tpu.core_type<tc>, window_params = [{transform_indices = @transform_0, window_bounds = array<i64: 1, 64, 128>}, {pipeline_mode = #tpu.pipeline_mode<synchronous>, transform_indices = @transform_1, window_bounds = array<i64: 8, 64>}, {pipeline_mode = #tpu.pipeline_mode<synchronous>, transform_indices = @transform_2, window_bounds = array<i64: 8, 1>}, {pipeline_mode = #tpu.pipeline_mode<synchronous>, transform_indices = @transform_3, window_bounds = array<i64: 8, 64>}, {pipeline_mode = #tpu.pipeline_mode<synchronous>, transform_indices = @transform_4, window_bounds = array<i64: 64, 64>}, {pipeline_mode = #tpu.pipeline_mode<synchronous>, transform_indices = @transform_5, window_bounds = array<i64: 64, 1>}, {transform_indices = @transform_6, window_bounds = array<i64: 1, 8, 128>}, {transform_indices = @transform_7, window_bounds = array<i64: 1, 8, 128>}, {transform_indices = @transform_8, window_bounds = array<i64: 1, 64, 128>}]} {
    %c0 = arith.constant 0 : index
    %c0_0 = arith.constant 0 : index
    %c0_1 = arith.constant 0 : index
    %0 = vector.load %arg2[%c0, %c0_0, %c0_1] : memref<1x64x128xf32, #tpu.memory_space<vmem>>, vector<1x64x128xf32>
    %1 = vector.shape_cast %0 : vector<1x64x128xf32> to vector<64x128xf32>
    %2 = arith.truncf %1 : vector<64x128xf32> to vector<64x128xbf16>
    %c0_2 = arith.constant 0 : index
    %c0_3 = arith.constant 0 : index
    %3 = vector.load %arg3[%c0_2, %c0_3] : memref<8x64xbf16, #tpu.memory_space<vmem>>, vector<8x64xbf16>
    %cst = arith.constant dense<0.000000e+00> : vector<8x128xf32>
    %4 = tpu.matmul %3, %2, %cst {dimension_numbers = #tpu.dot_dimension_numbers<[1], [0], [0], [1], [0, 0, 1, 1], [], []>} : vector<8x64xbf16>, vector<64x128xbf16>, vector<8x128xf32> -> vector<8x128xf32>
    %c0_4 = arith.constant 0 : index
    %c0_5 = arith.constant 0 : index
    %5 = vector.load %arg4[%c0_4, %c0_5] : memref<8x1xf32, #tpu.memory_space<vmem>>, vector<8x1xf32>
    %6 = vector.broadcast %5 : vector<8x1xf32> to vector<8x128xf32>
    %7 = arith.addf %4, %6 : vector<8x128xf32>
    %c0_6 = arith.constant 0 : index
    %c0_7 = arith.constant 0 : index
    %8 = vector.load %arg5[%c0_6, %c0_7] : memref<8x64xbf16, #tpu.memory_space<vmem>>, vector<8x64xbf16>
    %cst_8 = arith.constant dense<0.000000e+00> : vector<8x128xf32>
    %9 = tpu.matmul %8, %2, %cst_8 {dimension_numbers = #tpu.dot_dimension_numbers<[1], [0], [0], [1], [0, 0, 1, 1], [], []>} : vector<8x64xbf16>, vector<64x128xbf16>, vector<8x128xf32> -> vector<8x128xf32>
    %c0_9 = arith.constant 0 : index
    %c0_10 = arith.constant 0 : index
    %10 = vector.load %arg6[%c0_9, %c0_10] : memref<64x64xbf16, #tpu.memory_space<vmem>>, vector<64x64xbf16>
    %cst_11 = arith.constant dense<0.000000e+00> : vector<64x128xf32>
    %11 = tpu.matmul %10, %2, %cst_11 {dimension_numbers = #tpu.dot_dimension_numbers<[1], [0], [0], [1], [0, 0, 1, 1], [], []>} : vector<64x64xbf16>, vector<64x128xbf16>, vector<64x128xf32> -> vector<64x128xf32>
    %c0_12 = arith.constant 0 : index
    %c0_13 = arith.constant 0 : index
    %12 = vector.load %arg7[%c0_12, %c0_13] : memref<64x1xf32, #tpu.memory_space<vmem>>, vector<64x1xf32>
    %13 = vector.broadcast %12 : vector<64x1xf32> to vector<64x128xf32>
    %14 = arith.addf %11, %13 : vector<64x128xf32>
    %15 = arith.truncf %7 : vector<8x128xf32> to vector<8x128xbf16>
    %c0_14 = arith.constant 0 : index
    %c0_15 = arith.constant 0 : index
    %c0_16 = arith.constant 0 : index
    %16 = vector.load %arg8[%c0_14, %c0_15, %c0_16] : memref<1x8x128xbf16, #tpu.memory_space<vmem>>, vector<1x8x128xbf16>
    %17 = vector.shape_cast %16 : vector<1x8x128xbf16> to vector<8x128xbf16>
    %18 = vector.shape_cast %15 : vector<8x128xbf16> to vector<1x8x128xbf16>
    tpu.vector_store %arg8[%c0_14, %c0_15, %c0_16], %18 {strides = array<i32>} : memref<1x8x128xbf16, #tpu.memory_space<vmem>>, vector<1x8x128xbf16>,
    %19 = arith.truncf %9 : vector<8x128xf32> to vector<8x128xbf16>
    %c0_17 = arith.constant 0 : index
    %c0_18 = arith.constant 0 : index
    %c0_19 = arith.constant 0 : index
    %20 = vector.load %arg9[%c0_17, %c0_18, %c0_19] : memref<1x8x128xbf16, #tpu.memory_space<vmem>>, vector<1x8x128xbf16>
    %21 = vector.shape_cast %20 : vector<1x8x128xbf16> to vector<8x128xbf16>
    %22 = vector.shape_cast %19 : vector<8x128xbf16> to vector<1x8x128xbf16>
    tpu.vector_store %arg9[%c0_17, %c0_18, %c0_19], %22 {strides = array<i32>} : memref<1x8x128xbf16, #tpu.memory_space<vmem>>, vector<1x8x128xbf16>,
    %23 = arith.truncf %14 : vector<64x128xf32> to vector<64x128xbf16>
    %c0_20 = arith.constant 0 : index
    %c0_21 = arith.constant 0 : index
    %c0_22 = arith.constant 0 : index
    %24 = vector.load %arg10[%c0_20, %c0_21, %c0_22] : memref<1x64x128xbf16, #tpu.memory_space<vmem>>, vector<1x64x128xbf16>
    %25 = vector.shape_cast %24 : vector<1x64x128xbf16> to vector<64x128xbf16>
    %26 = vector.shape_cast %23 : vector<64x128xbf16> to vector<1x64x128xbf16>
    tpu.vector_store %arg10[%c0_20, %c0_21, %c0_22], %26 {strides = array<i32>} : memref<1x64x128xbf16, #tpu.memory_space<vmem>>, vector<1x64x128xbf16>,
    return
  }
  func.func @transform_0(%arg0: i32, %arg1: i32) -> (i32, i32, i32) {
    %c0_i32 = arith.constant 0 : i32
    %c0_i32_0 = arith.constant 0 : i32
    return %arg0, %c0_i32, %arg1 : i32, i32, i32
  }
  func.func @transform_1(%arg0: i32, %arg1: i32) -> (i32, i32) {
    %c0_i32 = arith.constant 0 : i32
    %c0_i32_0 = arith.constant 0 : i32
    %c0_i32_1 = arith.constant 0 : i32
    return %c0_i32, %c0_i32_0 : i32, i32
  }
  func.func @transform_2(%arg0: i32, %arg1: i32) -> (i32, i32) {
    %c0_i32 = arith.constant 0 : i32
    %c0_i32_0 = arith.constant 0 : i32
    %c0_i32_1 = arith.constant 0 : i32
    return %c0_i32, %c0_i32_0 : i32, i32
  }
  func.func @transform_3(%arg0: i32, %arg1: i32) -> (i32, i32) {
    %c0_i32 = arith.constant 0 : i32
    %c0_i32_0 = arith.constant 0 : i32
    %c0_i32_1 = arith.constant 0 : i32
    return %c0_i32, %c0_i32_0 : i32, i32
  }
  func.func @transform_4(%arg0: i32, %arg1: i32) -> (i32, i32) {
    %c0_i32 = arith.constant 0 : i32
    %c0_i32_0 = arith.constant 0 : i32
    %c0_i32_1 = arith.constant 0 : i32
    return %c0_i32, %c0_i32_0 : i32, i32
  }
  func.func @transform_5(%arg0: i32, %arg1: i32) -> (i32, i32) {
    %c0_i32 = arith.constant 0 : i32
    %c0_i32_0 = arith.constant 0 : i32
    %c0_i32_1 = arith.constant 0 : i32
    return %c0_i32, %c0_i32_0 : i32, i32
  }
  func.func @transform_6(%arg0: i32, %arg1: i32) -> (i32, i32, i32) {
    %c0_i32 = arith.constant 0 : i32
    %c0_i32_0 = arith.constant 0 : i32
    return %arg0, %c0_i32, %arg1 : i32, i32, i32
  }
  func.func @transform_7(%arg0: i32, %arg1: i32) -> (i32, i32, i32) {
    %c0_i32 = arith.constant 0 : i32
    %c0_i32_0 = arith.constant 0 : i32
    return %arg0, %c0_i32, %arg1 : i32, i32, i32
  }
  func.func @transform_8(%arg0: i32, %arg1: i32) -> (i32, i32, i32) {
    %c0_i32 = arith.constant 0 : i32
    %c0_i32_0 = arith.constant 0 : i32
    return %arg0, %c0_i32, %arg1 : i32, i32, i32
  }
}

</mosaic_0001>

<llo_original>
// kernel: tpu_custom_call.1
$region0: #{tpu_custom_call.1}
  #allocation0 [shape = 'u32[]', space=smem, size = 0x4, offset = 0x4, fixed_abs, tag = 'smem constant byte address 0x4 - core index']
  #allocation1 [shape = 'u32[72,128]{1,0:T(1,128)}', space=vmem, size = 0x9000, scoped, tag = 'internal scratch']
  %s0 = inlined_call_operand.hbm [shape: f32[2,64,384], index: 0, kind: input, shape index: {}]
  %s1 = inlined_call_operand.vmem [shape: bf16[8,64], index: 1, kind: input, shape index: {}]
  %s2 = inlined_call_operand.vmem [shape: f32[8,1], index: 2, kind: input, shape index: {}]
  %s3 = inlined_call_operand.vmem [shape: bf16[8,64], index: 3, kind: input, shape index: {}]
  %s4 = inlined_call_operand.vmem [shape: bf16[64,64], index: 4, kind: input, shape index: {}]
  %s5 = inlined_call_operand.vmem [shape: f32[64,1], index: 5, kind: input, shape index: {}]
  %s6 = inlined_call_operand.hbm [shape: bf16[2,8,384], index: 6, kind: output, shape index: {0}]
  %s7 = inlined_call_operand.hbm [shape: bf16[2,8,384], index: 7, kind: output, shape index: {1}]
  %s8 = inlined_call_operand.hbm [shape: bf16[2,64,384], index: 8, kind: output, shape index: {2}]
  %9 = xla_tuple %s6, %s7, %s8
  %s10 = sld [smem:[#allocation0]]
  $region77: #{tpu_custom_call.1} parent=0
    _
  %s12 = ssub.s32 1, %s10
  %s13 = scalar_select 0, %s12, %s10
  $region1: #{tpu_custom_call.1} parent=0
    #allocation2 [shape = 'u8[65536]{0}', space=vmem, size = 0x10000, scoped, tag = 'input window, operand 0']
    #allocation3 [shape = 's32[2]{0}', space=sflag, size = 0x8, scoped, tag = 'scoped memory for tpu_custom_call.1']
    #allocation4 [shape = 's32[2]{0}', space=sflag, size = 0x8, scoped, tag = 'scoped memory for tpu_custom_call.1']
    #allocation5 [shape = 'u8[4096]{0}', space=vmem, size = 0x1000, scoped, tag = 'output window, operand 0']
    #allocation6 [shape = 'u8[4096]{0}', space=vmem, size = 0x1000, scoped, tag = 'output window, operand 1']
    #allocation7 [shape = 's32[2]{0}', space=sflag, size = 0x8, scoped, tag = 'scoped memory for tpu_custom_call.1']
    #allocation8 [shape = 'u8[32768]{0}', space=vmem, size = 0x8000, scoped, tag = 'output window, operand 2']
    %14 = vsyncpa [#allocation3], 0
    %s15 = scalar_lea.sflag [#allocation3], 1
    %16 = vsyncpa %s15, 0
    %17 = vsyncpa [#allocation4], 0
    %s18 = scalar_lea.sflag [#allocation4], 1
    %19 = vsyncpa %s18, 0
    %20 = vsyncpa [#allocation7], 0
    %s21 = scalar_lea.sflag [#allocation7], 1
    %22 = vsyncpa %s21, 0
    loop: start=0, step=1, limit=8
    $region2: #{tpu_custom_call.1} parent=1 // loop_pre_header
      _
    $region3: #{tpu_custom_call.1} parent=1 // loop_header
      %s24 = sphi 0, %s28
      %p25 = scmp.ge.s32.totalorder %s24, 8
      %s31 = sphi 0, %s43
      %s32 = sphi 0, %s39
      %s33 = sphi 0, %s31
      %s34 = sphi 0, %s32
      %s35 = sphi 0, %s33
      %s36 = sphi 0, %s34
      %s48 = sphi 0, %s50
      %s51 = sphi 0, %s48
      %s52 = sphi 0, %s51
      %s68 = sphi 0, %s52
      %s72 = sphi 0, %s72
      %s74 = sphi 0, %s72
      %s75 = sphi 0, %s74
      %s89 = sphi 0, %s75
      %s93 = sphi 0, %s93
      %s95 = sphi 0, %s93
      %s96 = sphi 0, %s95
      %s110 = sphi 0, %s96
      %s114 = sphi 0, %s114
      %s116 = sphi 0, %s114
      %s117 = sphi 0, %s116
      %s131 = sphi 0, %s117
      %s135 = sphi 0, %s135
      %s137 = sphi 0, %s135
      %s138 = sphi 0, %s137
      %s152 = sphi 0, %s138
      %s156 = sphi 0, %s156
      %s158 = sphi 0, %s156
      %s159 = sphi 0, %s158
      %s173 = sphi 0, %s159
      %s181 = sphi 0, %s183
      %s184 = sphi 0, %s181
      %s185 = sphi 0, %s184
      %s201 = sphi 0, %s185
      %s209 = sphi 0, %s211
      %s212 = sphi 0, %s209
      %s213 = sphi 0, %s212
      %s229 = sphi 0, %s213
      %s237 = sphi 0, %s239
      %s240 = sphi 0, %s237
      %s241 = sphi 0, %s240
      %s257 = sphi 0, %s241
    $region4: #{tpu_custom_call.1} parent=1 // loop_header_branch
      %27 = sbr.rel (%p25) target = $region8
    $region5: #{tpu_custom_call.1} parent=1 // loop_body
      %s29 = ssub.s32 %s24, 1
      %s30 = ssub.s32 %s24, 2
      %s37 = sadd.s32 1, %s32
      %p38 = scmp.ge.s32.totalorder %s37, 3
      %s39 = scalar_select %p38, 0, %s37
      %s40 = sadd.s32 1, %s31
      %s41 = scalar_select %p38, %s40, %s31
      %p42 = scmp.ge.s32.totalorder %s41, 2
      %s43 = scalar_select %p42, 0, %s41
      %s44 = ssub.s32 %s31, %s43
      %s45 = ssub.s32 %s32, %s39
      %s46 = sor.u32 %s44, %s45
      %p47 = scmp.eq.s32.totalorder %s46, 0
      %s49 = sadd.s32 %s48, 1
      %s50 = scalar_select %p47, %s48, %s49
      %p53 = pneg %p47
      %p54 = scmp.eq.s32.totalorder %s24, 5
      %p55 = por %p53, %p54
      %p56 = scmp.ne.s32.totalorder %s48, %s51
      %p57 = scmp.eq.s32.totalorder %s24, 0
      %p58 = por %p56, %p57
      %p59 = scmp.ne.s32.totalorder %s48, %s51
      %p60 = scmp.eq.s32.totalorder %s29, 5
      %p61 = por %p59, %p60
      %p62 = scmp.ne.s32.totalorder %s51, %s52
      %p63 = scmp.eq.s32.totalorder %s29, 0
      %p64 = por %p62, %p63
      %p65 = scmp.ne.s32.totalorder %s51, %s52
      %p66 = scmp.eq.s32.totalorder %s30, 5
      %p67 = por %p65, %p66
      %p69 = scmp.ne.s32.totalorder %s52, %s68
      %p70 = scmp.eq.s32.totalorder %s30, 0
      %p71 = por %p69, %p70
      %s73 = sadd.s32 %s72, 1
      %p76 = scmp.eq.s32.totalorder %s24, 5
      %p77 = scmp.ne.s32.totalorder %s72, %s74
      %p78 = scmp.eq.s32.totalorder %s24, 0
      %p79 = por %p77, %p78
      %p80 = scmp.ne.s32.totalorder %s72, %s74
      %p81 = scmp.eq.s32.totalorder %s29, 5
      %p82 = por %p80, %p81
      %p83 = scmp.ne.s32.totalorder %s74, %s75
      %p84 = scmp.eq.s32.totalorder %s29, 0
      %p85 = por %p83, %p84
      %p86 = scmp.ne.s32.totalorder %s74, %s75
      %p87 = scmp.eq.s32.totalorder %s30, 5
      %p88 = por %p86, %p87
      %p90 = scmp.ne.s32.totalorder %s75, %s89
      %p91 = scmp.eq.s32.totalorder %s30, 0
      %p92 = por %p90, %p91
      %s94 = sadd.s32 %s93, 1
      %p97 = scmp.eq.s32.totalorder %s24, 5
      %p98 = scmp.ne.s32.totalorder %s93, %s95
      %p99 = scmp.eq.s32.totalorder %s24, 0
      %p100 = por %p98, %p99
      %p101 = scmp.ne.s32.totalorder %s93, %s95
      %p102 = scmp.eq.s32.totalorder %s29, 5
      %p103 = por %p101, %p102
      %p104 = scmp.ne.s32.totalorder %s95, %s96
      %p105 = scmp.eq.s32.totalorder %s29, 0
      %p106 = por %p104, %p105
      %p107 = scmp.ne.s32.totalorder %s95, %s96
      %p108 = scmp.eq.s32.totalorder %s30, 5
      %p109 = por %p107, %p108
      %p111 = scmp.ne.s32.totalorder %s96, %s110
      %p112 = scmp.eq.s32.totalorder %s30, 0
      %p113 = por %p111, %p112
      %s115 = sadd.s32 %s114, 1
      %p118 = scmp.eq.s32.totalorder %s24, 5
      %p119 = scmp.ne.s32.totalorder %s114, %s116
      %p120 = scmp.eq.s32.totalorder %s24, 0
      %p121 = por %p119, %p120
      %p122 = scmp.ne.s32.totalorder %s114, %s116
      %p123 = scmp.eq.s32.totalorder %s29, 5
      %p124 = por %p122, %p123
      %p125 = scmp.ne.s32.totalorder %s116, %s117
      %p126 = scmp.eq.s32.totalorder %s29, 0
      %p127 = por %p125, %p126
      %p128 = scmp.ne.s32.totalorder %s116, %s117
      %p129 = scmp.eq.s32.totalorder %s30, 5
      %p130 = por %p128, %p129
      %p132 = scmp.ne.s32.totalorder %s117, %s131
      %p133 = scmp.eq.s32.totalorder %s30, 0
      %p134 = por %p132, %p133
      %s136 = sadd.s32 %s135, 1
      %p139 = scmp.eq.s32.totalorder %s24, 5
      %p140 = scmp.ne.s32.totalorder %s135, %s137
      %p141 = scmp.eq.s32.totalorder %s24, 0
      %p142 = por %p140, %p141
      %p143 = scmp.ne.s32.totalorder %s135, %s137
      %p144 = scmp.eq.s32.totalorder %s29, 5
      %p145 = por %p143, %p144
      %p146 = scmp.ne.s32.totalorder %s137, %s138
      %p147 = scmp.eq.s32.totalorder %s29, 0
      %p148 = por %p146, %p147
      %p149 = scmp.ne.s32.totalorder %s137, %s138
      %p150 = scmp.eq.s32.totalorder %s30, 5
      %p151 = por %p149, %p150
      %p153 = scmp.ne.s32.totalorder %s138, %s152
      %p154 = scmp.eq.s32.totalorder %s30, 0
      %p155 = por %p153, %p154
      %s157 = sadd.s32 %s156, 1
      %p160 = scmp.eq.s32.totalorder %s24, 5
      %p161 = scmp.ne.s32.totalorder %s156, %s158
      %p162 = scmp.eq.s32.totalorder %s24, 0
      %p163 = por %p161, %p162
      %p164 = scmp.ne.s32.totalorder %s156, %s158
      %p165 = scmp.eq.s32.totalorder %s29, 5
      %p166 = por %p164, %p165
      %p167 = scmp.ne.s32.totalorder %s158, %s159
      %p168 = scmp.eq.s32.totalorder %s29, 0
      %p169 = por %p167, %p168
      %p170 = scmp.ne.s32.totalorder %s158, %s159
      %p171 = scmp.eq.s32.totalorder %s30, 5
      %p172 = por %p170, %p171
      %p174 = scmp.ne.s32.totalorder %s159, %s173
      %p175 = scmp.eq.s32.totalorder %s30, 0
      %p176 = por %p174, %p175
      %s177 = ssub.s32 %s31, %s43
      %s178 = ssub.s32 %s32, %s39
      %s179 = sor.u32 %s177, %s178
      %p180 = scmp.eq.s32.totalorder %s179, 0
      %s182 = sadd.s32 %s181, 1
      %s183 = scalar_select %p180, %s181, %s182
      %p186 = pneg %p180
      %p187 = scmp.eq.s32.totalorder %s24, 5
      %p188 = por %p186, %p187
      %p189 = scmp.ne.s32.totalorder %s181, %s184
      %p190 = scmp.eq.s32.totalorder %s24, 0
      %p191 = por %p189, %p190
      %p192 = scmp.ne.s32.totalorder %s181, %s184
      %p193 = scmp.eq.s32.totalorder %s29, 5
      %p194 = por %p192, %p193
      %p195 = scmp.ne.s32.totalorder %s184, %s185
      %p196 = scmp.eq.s32.totalorder %s29, 0
      %p197 = por %p195, %p196
      %p198 = scmp.ne.s32.totalorder %s184, %s185
      %p199 = scmp.eq.s32.totalorder %s30, 5
      %p200 = por %p198, %p199
      %p202 = scmp.ne.s32.totalorder %s185, %s201
      %p203 = scmp.eq.s32.totalorder %s30, 0
      %p204 = por %p202, %p203
      %s205 = ssub.s32 %s31, %s43
      %s206 = ssub.s32 %s32, %s39
      %s207 = sor.u32 %s205, %s206
      %p208 = scmp.eq.s32.totalorder %s207, 0
      %s210 = sadd.s32 %s209, 1
      %s211 = scalar_select %p208, %s209, %s210
      %p214 = pneg %p208
      %p215 = scmp.eq.s32.totalorder %s24, 5
      %p216 = por %p214, %p215
      %p217 = scmp.ne.s32.totalorder %s209, %s212
      %p218 = scmp.eq.s32.totalorder %s24, 0
      %p219 = por %p217, %p218
      %p220 = scmp.ne.s32.totalorder %s209, %s212
      %p221 = scmp.eq.s32.totalorder %s29, 5
      %p222 = por %p220, %p221
      %p223 = scmp.ne.s32.totalorder %s212, %s213
      %p224 = scmp.eq.s32.totalorder %s29, 0
      %p225 = por %p223, %p224
      %p226 = scmp.ne.s32.totalorder %s212, %s213
      %p227 = scmp.eq.s32.totalorder %s30, 5
      %p228 = por %p226, %p227
      %p230 = scmp.ne.s32.totalorder %s213, %s229
      %p231 = scmp.eq.s32.totalorder %s30, 0
      %p232 = por %p230, %p231
      %s233 = ssub.s32 %s31, %s43
      %s234 = ssub.s32 %s32, %s39
      %s235 = sor.u32 %s233, %s234
      %p236 = scmp.eq.s32.totalorder %s235, 0
      %s238 = sadd.s32 %s237, 1
      %s239 = scalar_select %p236, %s237, %s238
      %p242 = pneg %p236
      %p243 = scmp.eq.s32.totalorder %s24, 5
      %p244 = por %p242, %p243
      %p245 = scmp.ne.s32.totalorder %s237, %s240
      %p246 = scmp.eq.s32.totalorder %s24, 0
      %p247 = por %p245, %p246
      %p248 = scmp.ne.s32.totalorder %s237, %s240
      %p249 = scmp.eq.s32.totalorder %s29, 5
      %p250 = por %p248, %p249
      %p251 = scmp.ne.s32.totalorder %s240, %s241
      %p252 = scmp.eq.s32.totalorder %s29, 0
      %p253 = por %p251, %p252
      %p254 = scmp.ne.s32.totalorder %s240, %s241
      %p255 = scmp.eq.s32.totalorder %s30, 5
      %p256 = por %p254, %p255
      %p258 = scmp.ne.s32.totalorder %s241, %s257
      %p259 = scmp.eq.s32.totalorder %s30, 0
      %p260 = por %p258, %p259
      %p261 = scmp.le.s32.totalorder 1, %s24
      %p262 = scmp.lt.s32.totalorder %s24, 7
      %p263 = pnand %p261, %p262
      %p264 = pneg %p263
      // Predicated region
      $region9: #{tpu_custom_call.1} parent=5 // pred_check
        _
      $region10: #{tpu_custom_call.1} parent=5 // pred_check_branch
        %266 = sbr.rel (%p263) target = $region12
      $region11: #{tpu_custom_call.1} parent=5 // pred_region
        %s267 = ssub.s32 %s24, 1
        // Predicated region
        $region13: #{tpu_custom_call.1} parent=11 // pred_check
          %p268 = pneg %p85
        $region14: #{tpu_custom_call.1} parent=11 // pred_check_branch
          %270 = sbr.rel (%p268) target = $region16
        $region15: #{tpu_custom_call.1} parent=11 // pred_region
          _
        $region16: #{tpu_custom_call.1} parent=11 // pred_fallthru
          _
        // Predicated region
        $region17: #{tpu_custom_call.1} parent=11 // pred_check
          %p271 = pneg %p106
        $region18: #{tpu_custom_call.1} parent=11 // pred_check_branch
          %273 = sbr.rel (%p271) target = $region20
        $region19: #{tpu_custom_call.1} parent=11 // pred_region
          _
        $region20: #{tpu_custom_call.1} parent=11 // pred_fallthru
          _
        // Predicated region
        $region21: #{tpu_custom_call.1} parent=11 // pred_check
          %p274 = pneg %p127
        $region22: #{tpu_custom_call.1} parent=11 // pred_check_branch
          %276 = sbr.rel (%p274) target = $region24
        $region23: #{tpu_custom_call.1} parent=11 // pred_region
          _
        $region24: #{tpu_custom_call.1} parent=11 // pred_fallthru
          _
        // Predicated region
        $region25: #{tpu_custom_call.1} parent=11 // pred_check
          %p277 = pneg %p148
        $region26: #{tpu_custom_call.1} parent=11 // pred_check_branch
          %279 = sbr.rel (%p277) target = $region28
        $region27: #{tpu_custom_call.1} parent=11 // pred_region
          _
        $region28: #{tpu_custom_call.1} parent=11 // pred_fallthru
          _
        // Predicated region
        $region29: #{tpu_custom_call.1} parent=11 // pred_check
          %p280 = pneg %p169
        $region30: #{tpu_custom_call.1} parent=11 // pred_check_branch
          %282 = sbr.rel (%p280) target = $region32
        $region31: #{tpu_custom_call.1} parent=11 // pred_region
          _
        $region32: #{tpu_custom_call.1} parent=11 // pred_fallthru
          _
      $region12: #{tpu_custom_call.1} parent=5 // pred_fallthru
        _
      %p283 = scmp.lt.s32.totalorder %s24, 6
      // Predicated region
      $region33: #{tpu_custom_call.1} parent=5 // pred_check
        %p284 = pneg %p283
      $region34: #{tpu_custom_call.1} parent=5 // pred_check_branch
        %286 = sbr.rel (%p284) target = $region36
      $region35: #{tpu_custom_call.1} parent=5 // pred_region
        // Predicated region
        $region37: #{tpu_custom_call.1} parent=35 // pred_check
          %p287 = pneg %p58
        $region38: #{tpu_custom_call.1} parent=35 // pred_check_branch
          %289 = sbr.rel (%p287) target = $region40
        $region39: #{tpu_custom_call.1} parent=35 // pred_region
          %s290 = sand.u32 %s48, 1
          %s291 = scalar_lea.sflag [#allocation3], %s290
          %s292 = sand.u32 %s48, 1
          %s293 = smul.addr %s292, 64
          %s294 = scalar_lea.vmem [#allocation2], %s293
          %296 = vsyncadd %s291, 0
          %s297 = smul.addr %s31, 24
          %s298 = sadd.s32 %s32, %s297
          %s299 = smul.addr %s298, 8
          %s300 = scalar_lea.hbm %s0, %s299
          %s301 = sshll.u32 %s300, 4
          %s302 = int_to_ptr.hbm [resolvable:$true] %s301
          %s303 = sshll.u32 %s294, 4
          %s304 = int_to_ptr.vmem [resolvable:$true] %s303
          %309 = dma.hbm_to_vmem [thread:$0]  %s302, 1024, %s304, %s291, 384, 128, 8
        $region40: #{tpu_custom_call.1} parent=35 // pred_fallthru
          _
      $region36: #{tpu_custom_call.1} parent=5 // pred_fallthru
        _
      %p310 = scmp.le.s32.totalorder 1, %s24
      %p311 = scmp.lt.s32.totalorder %s24, 7
      %p312 = pnand %p310, %p311
      %p313 = pneg %p312
      // Predicated region
      $region41: #{tpu_custom_call.1} parent=5 // pred_check
        _
      $region42: #{tpu_custom_call.1} parent=5 // pred_check_branch
        %315 = sbr.rel (%p312) target = $region44
      $region43: #{tpu_custom_call.1} parent=5 // pred_region
        %s316 = ssub.s32 %s24, 1
        %s317 = sand.u32 %s51, 1
        %s318 = scalar_lea.sflag [#allocation3], %s317
        %s319 = sand.u32 %s51, 1
        %s320 = smul.addr %s319, 64
        %s321 = scalar_lea.vmem [#allocation2], %s320
        // Predicated region
        $region45: #{tpu_custom_call.1} parent=43 // pred_check
          %p322 = pneg %p64
        $region46: #{tpu_custom_call.1} parent=43 // pred_check_branch
          %324 = sbr.rel (%p322) target = $region48
        $region47: #{tpu_custom_call.1} parent=43 // pred_region
          %326 = dma.done %s318, 1024
        $region48: #{tpu_custom_call.1} parent=43 // pred_fallthru
          _
        %s327 = sand.u32 %s51, 1
        %s328 = scalar_lea.sflag [#allocation3], %s327
        %s329 = sand.u32 %s51, 1
        %s330 = smul.addr %s329, 64
        %s331 = scalar_lea.vmem [#allocation2], %s330
        %p332 = pneg %p64
        %p333 = pneg %p61
        %p334 = pneg %p85
        %p335 = pneg %p82
        %p336 = pneg %p106
        %p337 = pneg %p103
        %p338 = pneg %p127
        %p339 = pneg %p124
        %p340 = pneg %p148
        %p341 = pneg %p145
        %p342 = pneg %p169
        %p343 = pneg %p166
        %p344 = pneg %p197
        %p345 = pneg %p194
        %s346 = sand.u32 %s184, 1
        %s347 = scalar_lea.sflag [#allocation4], %s346
        %s348 = sand.u32 %s184, 1
        %s349 = smul.addr %s348, 4
        %s350 = scalar_lea.vmem [#allocation5], %s349
        %p351 = pneg %p225
        %p352 = pneg %p222
        %s353 = sand.u32 %s29, 1
        %s354 = scalar_lea.sflag [#allocation7], %s353
        %s355 = sand.u32 %s212, 1
        %s356 = smul.addr %s355, 4
        %s357 = scalar_lea.vmem [#allocation6], %s356
        %p358 = pneg %p253
        %p359 = pneg %p250
        %s360 = sand.u32 %s29, 1
        %s361 = scalar_lea.sflag [#allocation7], %s360
        %s362 = sand.u32 %s240, 1
        %s363 = smul.addr %s362, 32
        %s364 = scalar_lea.vmem [#allocation8], %s363
        %v366 = vld [vmem:[%s321] sm:$0xff]
        %v367 = vld [vmem:[%s321 + $0x8] sm:$0xff]
        %v368 = vld [vmem:[%s321 + $0x10] sm:$0xff]
        %v369 = vld [vmem:[%s321 + $0x18] sm:$0xff]
        %v370 = vld [vmem:[%s321 + $0x20] sm:$0xff]
        %v371 = vld [vmem:[%s321 + $0x28] sm:$0xff]
        %v372 = vld [vmem:[%s321 + $0x30] sm:$0xff]
        %v373 = vld [vmem:[%s321 + $0x38] sm:$0xff]
        %v374 = vpack.c.bf16 %v367, %v366
        %v375 = vpack.c.bf16 %v369, %v368
        %v376 = vpack.c.bf16 %v371, %v370
        %v377 = vpack.c.bf16 %v373, %v372
        %v378 = vld [vmem:[%s1] sm:$0xf]
        %v379 = vld [vmem:[%s2] sm:$0xff]
        %381 = vset.pattern.permute.xlu0 0
        %382 = vperm.xlu0 %381, %v379
        %v383 = vpop.permute.xlu0 %382
        %vm385 = vcmask 523264
        %v387 = vsel %vm385, %v378, 0
        %389 = vmatpush.bf16.msra.mxu0 0
        %390 = vmatpush.bf16.msra.mxu0 0
        %391 = vmatpush.bf16.msra.mxu0 0
        %392 = vmatpush.bf16.msra.mxu0 0
        %393 = vmatpush.bf16.msra.mxu0 %v377
        %394 = vmatpush.bf16.msra.mxu0 %v376
        %395 = vmatpush.bf16.msra.mxu0 %v375
        %396 = vmatpush.bf16.msra.mxu0 %v374
        %397 = vmatmul.bf16.gmra.mxu0 %v387
        %v398 = vpop.f32.mrf.mxu0
        %v399 = vadd.f32 %v383, %v398
        %v400 = vpop.f32.mrf.mxu0
        %401 = vdwg.mxu0
        %v402 = vld [vmem:[%s3] sm:$0xf]
        %v404 = vsel %vm385, %v402, 0
        %406 = vmatpush.bf16.msra.mxu0 0
        %407 = vmatpush.bf16.msra.mxu0 0
        %408 = vmatpush.bf16.msra.mxu0 0
        %409 = vmatpush.bf16.msra.mxu0 0
        %410 = vmatpush.bf16.msra.mxu0 %v377
        %411 = vmatpush.bf16.msra.mxu0 %v376
        %412 = vmatpush.bf16.msra.mxu0 %v375
        %413 = vmatpush.bf16.msra.mxu0 %v374
        %414 = vmatmul.bf16.gmra.mxu0 %v404
        %v415 = vpop.f32.mrf.mxu0
        %v416 = vadd.f32 0.0, %v415
        %v417 = vpop.f32.mrf.mxu0
        %418 = vdwg.mxu0
        %v419 = vld [vmem:[%s4] sm:$0xf]
        %v420 = vld [vmem:[%s4 + $0x4] sm:$0xf]
        %v421 = vld [vmem:[%s4 + $0x8] sm:$0xf]
        %v422 = vld [vmem:[%s4 + $0xc] sm:$0xf]
        %v423 = vld [vmem:[%s4 + $0x10] sm:$0xf]
        %v424 = vld [vmem:[%s4 + $0x14] sm:$0xf]
        %v425 = vld [vmem:[%s4 + $0x18] sm:$0xf]
        %v426 = vld [vmem:[%s4 + $0x1c] sm:$0xf]
        %v427 = vld [vmem:[%s5] sm:$0xff]
        %v428 = vld [vmem:[%s5 + $0x8] sm:$0xff]
        %v429 = vld [vmem:[%s5 + $0x10] sm:$0xff]
        %v430 = vld [vmem:[%s5 + $0x18] sm:$0xff]
        %v431 = vld [vmem:[%s5 + $0x20] sm:$0xff]
        %v432 = vld [vmem:[%s5 + $0x28] sm:$0xff]
        %v433 = vld [vmem:[%s5 + $0x30] sm:$0xff]
        %v434 = vld [vmem:[%s5 + $0x38] sm:$0xff]
        %436 = vset.pattern.permute.xlu0 0
        %437 = vperm.xlu0 %436, %v427
        %v438 = vpop.permute.xlu0 %437
        %441 = vset.pattern.permute.xlu0 0
        %442 = vperm.xlu0 %441, %v428
        %v443 = vpop.permute.xlu0 %442
        %446 = vset.pattern.permute.xlu0 0
        %447 = vperm.xlu0 %446, %v429
        %v448 = vpop.permute.xlu0 %447
        %451 = vset.pattern.permute.xlu0 0
        %452 = vperm.xlu0 %451, %v430
        %v453 = vpop.permute.xlu0 %452
        %456 = vset.pattern.permute.xlu0 0
        %457 = vperm.xlu0 %456, %v431
        %v458 = vpop.permute.xlu0 %457
        %461 = vset.pattern.permute.xlu0 0
        %462 = vperm.xlu0 %461, %v432
        %v463 = vpop.permute.xlu0 %462
        %466 = vset.pattern.permute.xlu0 0
        %467 = vperm.xlu0 %466, %v433
        %v468 = vpop.permute.xlu0 %467
        %471 = vset.pattern.permute.xlu0 0
        %472 = vperm.xlu0 %471, %v434
        %v473 = vpop.permute.xlu0 %472
        %v483 = vunpack.c.l.b16 %v419
        %v484 = vunpack.c.l.b16 %v420
        %v485 = vunpack.c.l.b16 %v421
        %v486 = vunpack.c.l.b16 %v422
        %v487 = vunpack.c.l.b16 %v423
        %v488 = vunpack.c.l.b16 %v424
        %v489 = vunpack.c.l.b16 %v425
        %v490 = vunpack.c.l.b16 %v426
        %v491 = vpack.c.b16 %v484, %v483
        %v492 = vpack.c.b16 %v486, %v485
        %v493 = vpack.c.b16 %v488, %v487
        %v494 = vpack.c.b16 %v490, %v489
        %v496 = vsel %vm385, %v491, 0
        %v499 = vsel %vm385, %v492, 0
        %v502 = vsel %vm385, %v493, 0
        %v505 = vsel %vm385, %v494, 0
        %507 = vmatpush.bf16.msra.mxu0 0
        %508 = vmatpush.bf16.msra.mxu0 0
        %509 = vmatpush.bf16.msra.mxu0 0
        %510 = vmatpush.bf16.msra.mxu0 0
        %511 = vmatpush.bf16.msra.mxu0 %v377
        %512 = vmatpush.bf16.msra.mxu0 %v376
        %513 = vmatpush.bf16.msra.mxu0 %v375
        %514 = vmatpush.bf16.msra.mxu0 %v374
        %515 = vmatmul.bf16.gmra.mxu0 %v496
        %v516 = vpop.f32.mrf.mxu0
        %v517 = vadd.f32 %v438, %v516
        %v518 = vpop.f32.mrf.mxu0
        %v519 = vadd.f32 %v443, %v518
        %520 = vmatmul.bf16.gmra.mxu0 %v499
        %v521 = vpop.f32.mrf.mxu0
        %v522 = vadd.f32 %v448, %v521
        %v523 = vpop.f32.mrf.mxu0
        %v524 = vadd.f32 %v453, %v523
        %525 = vmatmul.bf16.gmra.mxu0 %v502
        %v526 = vpop.f32.mrf.mxu0
        %v527 = vadd.f32 %v458, %v526
        %v528 = vpop.f32.mrf.mxu0
        %v529 = vadd.f32 %v463, %v528
        %530 = vmatmul.bf16.gmra.mxu0 %v505
        %v531 = vpop.f32.mrf.mxu0
        %v532 = vadd.f32 %v468, %v531
        %v533 = vpop.f32.mrf.mxu0
        %v534 = vadd.f32 %v473, %v533
        %535 = vdwg.mxu0
        %v536 = vpack.c.bf16 %v399, %v399
        %537 = vst [vmem:[%s350] sm:$0xf] %v536
        %v538 = vpack.c.bf16 %v416, %v416
        %539 = vst [vmem:[%s357] sm:$0xf] %v538
        %v540 = vpack.c.bf16 %v517, %v517
        %v541 = vpack.c.bf16 %v519, %v519
        %v542 = vpack.c.bf16 %v522, %v522
        %v543 = vpack.c.bf16 %v524, %v524
        %v544 = vpack.c.bf16 %v527, %v527
        %v545 = vpack.c.bf16 %v529, %v529
        %v546 = vpack.c.bf16 %v532, %v532
        %v547 = vpack.c.bf16 %v534, %v534
        %548 = vst [vmem:[%s364] sm:$0xf] %v540
        %549 = vst [vmem:[%s364 + $0x4] sm:$0xf] %v541
        %550 = vst [vmem:[%s364 + $0x8] sm:$0xf] %v542
        %551 = vst [vmem:[%s364 + $0xc] sm:$0xf] %v543
        %552 = vst [vmem:[%s364 + $0x10] sm:$0xf] %v544
        %553 = vst [vmem:[%s364 + $0x14] sm:$0xf] %v545
        %554 = vst [vmem:[%s364 + $0x18] sm:$0xf] %v546
        %555 = vst [vmem:[%s364 + $0x1c] sm:$0xf] %v547
        %s556 = sand.u32 %s184, 1
        %s557 = scalar_lea.sflag [#allocation4], %s556
        %s558 = sand.u32 %s184, 1
        %s559 = smul.addr %s558, 4
        %s560 = scalar_lea.vmem [#allocation5], %s559
        %s561 = sand.u32 %s29, 1
        %s562 = scalar_lea.sflag [#allocation7], %s561
        %s563 = sand.u32 %s212, 1
        %s564 = smul.addr %s563, 4
        %s565 = scalar_lea.vmem [#allocation6], %s564
        %s566 = sand.u32 %s29, 1
        %s567 = scalar_lea.sflag [#allocation7], %s566
        %s568 = sand.u32 %s240, 1
        %s569 = smul.addr %s568, 32
        %s570 = scalar_lea.vmem [#allocation8], %s569
        // Predicated region
        $region49: #{tpu_custom_call.1} parent=43 // pred_check
          %p571 = pneg %p194
        $region50: #{tpu_custom_call.1} parent=43 // pred_check_branch
          %573 = sbr.rel (%p571) target = $region52
        $region51: #{tpu_custom_call.1} parent=43 // pred_region
          %575 = vsyncadd %s557, 0
          %s576 = smul.addr %s33, 3
          %s577 = sadd.s32 %s34, %s576
          %s578 = smul.addr %s577, 4
          %s579 = scalar_lea.hbm %s6, %s578
          %s581 = sshll.u32 %s560, 4
          %s582 = int_to_ptr.vmem [resolvable:$true] %s581
          %s583 = sshll.u32 %s579, 4
          %s584 = int_to_ptr.hbm [resolvable:$true] %s583
          %586 = dma.vmem_to_hbm [thread:$0]  %s582, 64, %s584, %s557
        $region52: #{tpu_custom_call.1} parent=43 // pred_fallthru
          _
        // Predicated region
        $region53: #{tpu_custom_call.1} parent=43 // pred_check
          %p587 = pneg %p222
        $region54: #{tpu_custom_call.1} parent=43 // pred_check_branch
          %589 = sbr.rel (%p587) target = $region56
        $region55: #{tpu_custom_call.1} parent=43 // pred_region
          %591 = vsyncadd %s562, 0
          %s592 = smul.addr %s33, 3
          %s593 = sadd.s32 %s34, %s592
          %s594 = smul.addr %s593, 4
          %s595 = scalar_lea.hbm %s7, %s594
          %s597 = sshll.u32 %s565, 4
          %s598 = int_to_ptr.vmem [resolvable:$true] %s597
          %s599 = sshll.u32 %s595, 4
          %s600 = int_to_ptr.hbm [resolvable:$true] %s599
          %602 = dma.vmem_to_hbm [thread:$0]  %s598, 64, %s600, %s562
        $region56: #{tpu_custom_call.1} parent=43 // pred_fallthru
          _
        // Predicated region
        $region57: #{tpu_custom_call.1} parent=43 // pred_check
          %p603 = pneg %p250
        $region58: #{tpu_custom_call.1} parent=43 // pred_check_branch
          %605 = sbr.rel (%p603) target = $region60
        $region59: #{tpu_custom_call.1} parent=43 // pred_region
          %607 = vsyncadd %s567, 0
          %s608 = smul.addr %s33, 24
          %s609 = sadd.s32 %s34, %s608
          %s610 = smul.addr %s609, 4
          %s611 = scalar_lea.hbm %s8, %s610
          %s612 = sshll.u32 %s570, 4
          %s613 = int_to_ptr.vmem [resolvable:$true] %s612
          %s614 = sshll.u32 %s611, 4
          %s615 = int_to_ptr.hbm [resolvable:$true] %s614
          %620 = dma.vmem_to_hbm [thread:$0]  %s613, 512, %s615, %s567, 64, 192, 4
        $region60: #{tpu_custom_call.1} parent=43 // pred_fallthru
          _
      $region44: #{tpu_custom_call.1} parent=5 // pred_fallthru
        _
      %p621 = scmp.le.s32.totalorder 2, %s24
      // Predicated region
      $region61: #{tpu_custom_call.1} parent=5 // pred_check
        %p622 = pneg %p621
      $region62: #{tpu_custom_call.1} parent=5 // pred_check_branch
        %624 = sbr.rel (%p622) target = $region64
      $region63: #{tpu_custom_call.1} parent=5 // pred_region
        %s625 = ssub.s32 %s24, 2
        // Predicated region
        $region65: #{tpu_custom_call.1} parent=63 // pred_check
          %p626 = pneg %p200
        $region66: #{tpu_custom_call.1} parent=63 // pred_check_branch
          %628 = sbr.rel (%p626) target = $region68
        $region67: #{tpu_custom_call.1} parent=63 // pred_region
          %s629 = sand.u32 %s185, 1
          %s630 = scalar_lea.sflag [#allocation4], %s629
          %s631 = sand.u32 %s185, 1
          %s632 = smul.addr %s631, 4
          %s633 = scalar_lea.vmem [#allocation5], %s632
          %635 = dma.done %s630, 64
        $region68: #{tpu_custom_call.1} parent=63 // pred_fallthru
          _
        // Predicated region
        $region69: #{tpu_custom_call.1} parent=63 // pred_check
          %p636 = pneg %p228
        $region70: #{tpu_custom_call.1} parent=63 // pred_check_branch
          %638 = sbr.rel (%p636) target = $region72
        $region71: #{tpu_custom_call.1} parent=63 // pred_region
          %s639 = sand.u32 %s30, 1
          %s640 = scalar_lea.sflag [#allocation7], %s639
          %s641 = sand.u32 %s213, 1
          %s642 = smul.addr %s641, 4
          %s643 = scalar_lea.vmem [#allocation6], %s642
          %645 = dma.done %s640, 64
        $region72: #{tpu_custom_call.1} parent=63 // pred_fallthru
          _
        // Predicated region
        $region73: #{tpu_custom_call.1} parent=63 // pred_check
          %p646 = pneg %p256
        $region74: #{tpu_custom_call.1} parent=63 // pred_check_branch
          %648 = sbr.rel (%p646) target = $region76
        $region75: #{tpu_custom_call.1} parent=63 // pred_region
          %s649 = sand.u32 %s30, 1
          %s650 = scalar_lea.sflag [#allocation7], %s649
          %s651 = sand.u32 %s241, 1
          %s652 = smul.addr %s651, 32
          %s653 = scalar_lea.vmem [#allocation8], %s652
          %655 = dma.done %s650, 512
        $region76: #{tpu_custom_call.1} parent=63 // pred_fallthru
          _
      $region64: #{tpu_custom_call.1} parent=5 // pred_fallthru
        _
    $region6: #{tpu_custom_call.1} parent=1 // loop_footer
      %s28 = sadd.s32 1, %s24
    $region7: #{tpu_custom_call.1} parent=1 // loop_footer_branch
      %23 = sbr.rel target = $region3
    $region8: #{tpu_custom_call.1} parent=1 // loop_exit
      _
    %656 = vsyncpa [#allocation3], 1
    %s657 = scalar_lea.sflag [#allocation3], 1
    %658 = vsyncpa %s657, 1
    %659 = vsyncpa [#allocation4], 1
    %s660 = scalar_lea.sflag [#allocation4], 1
    %661 = vsyncpa %s660, 1
    %662 = vsyncpa [#allocation7], 1
    %s663 = scalar_lea.sflag [#allocation7], 1
    %664 = vsyncpa %s663, 1

</llo_original>
